<compile_context>
chip_gen: v6e
topology: v6e:2x2x1
jax: 0.10.0
libtpu: 0.0.40
codegen_flags: <defaults>
</compile_context>

<pallas_src>
import jax
import jax.numpy as jnp
from jax import lax
from jax.experimental import pallas as pl
from jax.experimental.pallas import tpu as pltpu


def _ctg_kernel(x_ref, wf_ref, b_ref, o_ref):
    # x_ref : (Tt, C_in*V)        MXU input dtype
    # wf_ref: (C_in*V, C_out*V)   per-batch fused weight, MXU input dtype
    # b_ref : (1, C_out*V)        per-batch effective bias, f32
    # o_ref : (Tt, C_out*V)
    acc = jnp.dot(x_ref[...], wf_ref[...], preferred_element_type=jnp.float32)
    o_ref[...] = (acc + b_ref[...]).astype(o_ref.dtype)


def _vmem_capacity_bytes():
    """Per-core VMEM capacity; conservative (v7x) fallback if query fails."""
    try:
        info = pltpu.get_tpu_info()
        cap = getattr(info, "vmem_capacity_bytes", None)
        if cap:
            return int(cap)
    except Exception:
        pass
    return 64 * 1024 * 1024


def _pick_t_tile(T, N, cin_v, cout_v, in_bytes, out_bytes, w_bytes, budget_bytes):
    """Largest T tile (divisor of T, multiple of 8 or full T) whose per-step
    working set fits the budget; prefers >=2 total grid steps (v7x megacore)."""
    legal = [d for d in range(T, 0, -1) if T % d == 0 and (d % 8 == 0 or d == T)]
    fixed = 2 * cin_v * cout_v * w_bytes + 2 * cout_v * 4          # Wf (x2 buf) + bias
    per_t = 2 * cin_v * in_bytes + 2 * cout_v * out_bytes + cout_v * 4
    fitting = [d for d in legal if fixed + d * per_t <= budget_bytes] or [legal[-1]]
    best = fitting[0]                                              # largest fitting
    if N * (T // best) < 2:                                        # feed the 2nd TC
        for d in fitting:
            if N * (T // d) >= 2:
                best = d
                break
    return best


def conv_temporal_graphical(x, A, weight, bias, *, mxu_dtype=None, t_tile=None,
                            vmem_limit_bytes=None):
    """Pallas forward of ConvTemporalGraphical.

    x: [N, C_in, T, V]; A: [N, K, V, V];
    weight: [K, C_out, C_in]  (== PyTorch conv weight [K*C_out, C_in, 1, 1]);
    bias: [K, C_out].
    mxu_dtype: cast MXU operands (recommended: jnp.bfloat16 on v5e/v6e/v7x);
    accumulation stays f32.  Returns (out [N, C_out, T, V], A).
    """
    N, C_in, T, V = x.shape
    K, C_out, _ = weight.shape
    assert A.shape == (N, K, V, V), A.shape
    assert bias.shape == (K, C_out), bias.shape

    out_dtype = x.dtype
    f32 = jnp.float32
    hi = lax.Precision.HIGHEST

    # --- XLA-side per-batch preparation (amortized over all T steps) ----------
    # Fused weight: Wf[n, (i,v), (c,w)] = sum_k weight[k,c,i] * A[n,k,v,w]
    wf = jnp.einsum('kci,nkvw->nivcw', weight.astype(f32), A.astype(f32),
                    precision=hi).reshape(N, C_in * V, C_out * V)
    # Effective bias: bias_eff[n, c, w] = sum_k bias[k,c] * sum_v A[n,k,v,w]
    b_eff = jnp.einsum('kc,nkvw->ncw', bias.astype(f32), A.astype(f32),
                       precision=hi).reshape(N, 1, C_out * V)

    mxu = mxu_dtype if mxu_dtype is not None else x.dtype
    x_t = jnp.transpose(x, (0, 2, 1, 3)).reshape(N, T, C_in * V).astype(mxu)
    wf = wf.astype(mxu)

    cin_v, cout_v = C_in * V, C_out * V

    # --- generation-aware, self-consistent VMEM budgeting ---------------------
    cap = _vmem_capacity_bytes()
    if vmem_limit_bytes is None:
        vmem_limit_bytes = int(cap * 0.6)
    if t_tile is None:
        t_tile = _pick_t_tile(T, N, cin_v, cout_v,
                              jnp.dtype(mxu).itemsize,
                              jnp.dtype(out_dtype).itemsize,
                              jnp.dtype(mxu).itemsize,
                              int(cap * 0.4))
    assert T % t_tile == 0 and (t_tile % 8 == 0 or t_tile == T), (
        "t_tile must divide T and be a multiple of 8 (or the full T block)")
    n_tt = T // t_tile

    # Note: for tiny-C_in layers (DMA/latency-bound) pipeline_mode=pl.Buffered(3)
    # on the x spec is a further option; left at the default depth here.
    out_t = pl.pallas_call(
        _ctg_kernel,
        out_shape=jax.ShapeDtypeStruct((N, T, cout_v), out_dtype),
        grid_spec=pltpu.PrefetchScalarGridSpec(
            num_scalar_prefetch=0,
            grid=(N, n_tt),
            in_specs=[
                # one batch, one T tile, full lane-dense (i,v) contraction axis
                pl.BlockSpec((None, t_tile, cin_v), lambda n, t: (n, t, 0)),
                # per-batch fused weight: fetched once per batch (constant in t)
                pl.BlockSpec((None, cin_v, cout_v), lambda n, t: (n, 0, 0)),
                # per-batch effective bias
                pl.BlockSpec((None, 1, cout_v), lambda n, t: (n, 0, 0)),
            ],
            out_specs=pl.BlockSpec((None, t_tile, cout_v), lambda n, t: (n, t, 0)),
        ),
        compiler_params=pltpu.CompilerParams(
            dimension_semantics=("parallel", "parallel"),
            vmem_limit_bytes=vmem_limit_bytes),
    )(x_t, wf, b_eff)

    # (N, T, C_out*V) -> (N, C_out, T, V)
    out = jnp.transpose(out_t.reshape(N, T, C_out, V), (0, 2, 1, 3))
    return out, A


def _reference(x, A, weight, bias):
    hi = lax.Precision.HIGHEST
    y = jnp.einsum('koi,nitv->nkotv', weight, x, precision=hi)
    y = y + bias[None, :, :, None, None]
    return jnp.einsum('nkctv,nkvw->nctw', y, A, precision=hi)


if __name__ == "__main__":
    key = jax.random.PRNGKey(0)
    N, C_in, C_out, K, T, V = 2, 4, 8, 3, 16, 16

    kx, ka, kw, kb = jax.random.split(key, 4)
    x = jax.random.normal(kx, (N, C_in, T, V), dtype=jnp.float32)
    A = jax.random.normal(ka, (N, K, V, V), dtype=jnp.float32)
    weight = jax.random.normal(kw, (K, C_out, C_in), dtype=jnp.float32) * 0.1
    bias = jax.random.normal(kb, (K, C_out), dtype=jnp.float32) * 0.1

    ref = _reference(x, A, weight, bias)

    # f32 path, auto-picked T tile
    out, A_out = conv_temporal_graphical(x, A, weight, bias)
    out = jax.block_until_ready(out)
    assert out.shape == (N, C_out, T, V)
    assert jnp.allclose(out, ref, atol=1e-3, rtol=1e-3), "f32 mismatch vs reference"
    assert jnp.array_equal(A_out, A)

    # explicit T tiling: two 8-row tiles per batch element
    out2, _ = conv_temporal_graphical(x, A, weight, bias, t_tile=8)
    out2 = jax.block_until_ready(out2)
    assert jnp.allclose(out2, ref, atol=1e-3, rtol=1e-3), "tiled mismatch vs reference"

    # real-skeleton-style node count (V=25, T not a multiple of 8) -> full-T block,
    # no 128-lane divisibility requirement on V anymore
    V2, T2 = 25, 12
    x3 = jax.random.normal(kx, (N, C_in, T2, V2), dtype=jnp.float32)
    A3 = jax.random.normal(ka, (N, K, V2, V2), dtype=jnp.float32)
    ref3 = _reference(x3, A3, weight, bias)
    out3, _ = conv_temporal_graphical(x3, A3, weight, bias)
    out3 = jax.block_until_ready(out3)
    assert out3.shape == (N, C_out, T2, V2)
    assert jnp.allclose(out3, ref3, atol=1e-3, rtol=1e-3), "V=25 mismatch vs reference"

    # bf16 MXU-operand fast path (recommended on v5e/v6e/v7x), f32 accumulation
    out_bf, _ = conv_temporal_graphical(x, A, weight, bias, mxu_dtype=jnp.bfloat16)
    out_bf = jax.block_until_ready(out_bf)
    assert jnp.allclose(out_bf, ref, atol=1e-1, rtol=1e-1), "bf16 mismatch vs reference"

    print("KERNEL_OK")
</pallas_src>

<mosaic_0001>
module attributes {stable_mosaic.version = 11 : i64} {
  func.func @_ctg_kernel(%arg0: i32, %arg1: i32, %arg2: memref<1x16x64xf32, #tpu.memory_space<vmem>>, %arg3: memref<1x64x128xf32, #tpu.memory_space<vmem>>, %arg4: memref<1x1x128xf32, #tpu.memory_space<vmem>>, %arg5: memref<1x16x128xf32, #tpu.memory_space<vmem>>) attributes {dimension_semantics = [#tpu.dimension_semantics<parallel>, #tpu.dimension_semantics<parallel>], iteration_bounds = array<i64: 2, 1>, scalar_prefetch = 0 : i64, scratch_operands = 0 : i64, tpu.core_type = #tpu.core_type<tc>, window_params = [{transform_indices = @transform_0, window_bounds = array<i64: 1, 16, 64>}, {transform_indices = @transform_1, window_bounds = array<i64: 1, 64, 128>}, {transform_indices = @transform_2, window_bounds = array<i64: 1, 1, 128>}, {transform_indices = @transform_3, window_bounds = array<i64: 1, 16, 128>}]} {
    %c0 = arith.constant 0 : index
    %c0_0 = arith.constant 0 : index
    %c0_1 = arith.constant 0 : index
    %0 = vector.load %arg2[%c0, %c0_0, %c0_1] : memref<1x16x64xf32, #tpu.memory_space<vmem>>, vector<1x16x64xf32>
    %1 = vector.shape_cast %0 : vector<1x16x64xf32> to vector<16x64xf32>
    %c0_2 = arith.constant 0 : index
    %c0_3 = arith.constant 0 : index
    %c0_4 = arith.constant 0 : index
    %2 = vector.load %arg3[%c0_2, %c0_3, %c0_4] : memref<1x64x128xf32, #tpu.memory_space<vmem>>, vector<1x64x128xf32>
    %3 = vector.shape_cast %2 : vector<1x64x128xf32> to vector<64x128xf32>
    %cst = arith.constant dense<0.000000e+00> : vector<16x128xf32>
    %4 = tpu.matmul %1, %3, %cst {dimension_numbers = #tpu.dot_dimension_numbers<[1], [0], [0], [1], [0, 0, 1, 1], [], []>} : vector<16x64xf32>, vector<64x128xf32>, vector<16x128xf32> -> vector<16x128xf32>
    %c0_5 = arith.constant 0 : index
    %c0_6 = arith.constant 0 : index
    %c0_7 = arith.constant 0 : index
    %5 = vector.load %arg4[%c0_5, %c0_6, %c0_7] : memref<1x1x128xf32, #tpu.memory_space<vmem>>, vector<1x1x128xf32>
    %6 = vector.shape_cast %5 : vector<1x1x128xf32> to vector<1x128xf32>
    %7 = vector.broadcast %6 : vector<1x128xf32> to vector<16x128xf32>
    %8 = arith.addf %4, %7 : vector<16x128xf32>
    %c0_8 = arith.constant 0 : index
    %c0_9 = arith.constant 0 : index
    %c0_10 = arith.constant 0 : index
    %9 = vector.load %arg5[%c0_8, %c0_9, %c0_10] : memref<1x16x128xf32, #tpu.memory_space<vmem>>, vector<1x16x128xf32>
    %10 = vector.shape_cast %9 : vector<1x16x128xf32> to vector<16x128xf32>
    %11 = vector.shape_cast %8 : vector<16x128xf32> to vector<1x16x128xf32>
    tpu.vector_store %arg5[%c0_8, %c0_9, %c0_10], %11 {strides = array<i32>} : memref<1x16x128xf32, #tpu.memory_space<vmem>>, vector<1x16x128xf32>,
    return
  }
  func.func @transform_0(%arg0: i32, %arg1: i32) -> (i32, i32, i32) {
    %c0_i32 = arith.constant 0 : i32
    %c0_i32_0 = arith.constant 0 : i32
    return %arg0, %arg1, %c0_i32 : i32, i32, i32
  }
  func.func @transform_1(%arg0: i32, %arg1: i32) -> (i32, i32, i32) {
    %c0_i32 = arith.constant 0 : i32
    %c0_i32_0 = arith.constant 0 : i32
    %c0_i32_1 = arith.constant 0 : i32
    return %arg0, %c0_i32, %c0_i32_0 : i32, i32, i32
  }
  func.func @transform_2(%arg0: i32, %arg1: i32) -> (i32, i32, i32) {
    %c0_i32 = arith.constant 0 : i32
    %c0_i32_0 = arith.constant 0 : i32
    %c0_i32_1 = arith.constant 0 : i32
    return %arg0, %c0_i32, %c0_i32_0 : i32, i32, i32
  }
  func.func @transform_3(%arg0: i32, %arg1: i32) -> (i32, i32, i32) {
    %c0_i32 = arith.constant 0 : i32
    %c0_i32_0 = arith.constant 0 : i32
    return %arg0, %arg1, %c0_i32 : i32, i32, i32
  }
}

</mosaic_0001>

<llo_original>
// kernel: tpu_custom_call.1
$region0: #{tpu_custom_call.1}
  #allocation0 [shape = 'u32[]', space=smem, size = 0x4, offset = 0x4, fixed_abs, tag = 'smem constant byte address 0x4 - core index']
  #allocation1 [shape = 'u32[144,128]{1,0:T(1,128)}', space=vmem, size = 0x12000, scoped, tag = 'internal scratch']
  %s0 = inlined_call_operand.hbm [shape: f32[2,16,64], index: 0, kind: input, shape index: {}]
  %s1 = inlined_call_operand.hbm [shape: f32[2,64,128], index: 1, kind: input, shape index: {}]
  %s2 = inlined_call_operand.vmem [shape: f32[2,1,128], index: 2, kind: input, shape index: {}]
  %s3 = inlined_call_operand.hbm [shape: f32[2,16,128], index: 3, kind: output, shape index: {}]
  %s4 = sld [smem:[#allocation0]]
  $region53: #{tpu_custom_call.1} parent=0
    _
  %s6 = ssub.s32 1, %s4
  %s7 = scalar_select 0, %s6, %s4
  $region1: #{tpu_custom_call.1} parent=0
    #allocation2 [shape = 'u8[16384]{0}', space=vmem, size = 0x4000, scoped, tag = 'input window, operand 0']
    #allocation3 [shape = 's32[2]{0}', space=sflag, size = 0x8, scoped, tag = 'scoped memory for tpu_custom_call.1']
    #allocation4 [shape = 's32[2]{0}', space=sflag, size = 0x8, scoped, tag = 'scoped memory for tpu_custom_call.1']
    #allocation5 [shape = 'u8[65536]{0}', space=vmem, size = 0x10000, scoped, tag = 'input window, operand 1']
    #allocation6 [shape = 's32[2]{0}', space=sflag, size = 0x8, scoped, tag = 'scoped memory for tpu_custom_call.1']
    #allocation7 [shape = 'u8[16384]{0}', space=vmem, size = 0x4000, scoped, tag = 'output window, operand 0']
    %8 = vsyncpa [#allocation3], 0
    %s9 = scalar_lea.sflag [#allocation3], 1
    %10 = vsyncpa %s9, 0
    %11 = vsyncpa [#allocation6], 0
    %s12 = scalar_lea.sflag [#allocation6], 1
    %13 = vsyncpa %s12, 0
    %14 = vsyncpa [#allocation4], 0
    %s15 = scalar_lea.sflag [#allocation4], 1
    %16 = vsyncpa %s15, 0
    loop: start=0, step=1, limit=4
    $region2: #{tpu_custom_call.1} parent=1 // loop_pre_header
      _
    $region3: #{tpu_custom_call.1} parent=1 // loop_header
      %s18 = sphi 0, %s22
      %p19 = scmp.ge.s32.totalorder %s18, 4
      %s25 = sphi 0, %s37
      %s26 = sphi 0, %s33
      %s27 = sphi 0, %s25
      %s28 = sphi 0, %s26
      %s29 = sphi 0, %s27
      %s30 = sphi 0, %s28
      %s42 = sphi 0, %s44
      %s45 = sphi 0, %s42
      %s46 = sphi 0, %s45
      %s62 = sphi 0, %s46
      %s68 = sphi 0, %s70
      %s71 = sphi 0, %s68
      %s72 = sphi 0, %s71
      %s88 = sphi 0, %s72
      %s94 = sphi 0, %s96
      %s97 = sphi 0, %s94
      %s98 = sphi 0, %s97
      %s114 = sphi 0, %s98
      %s122 = sphi 0, %s124
      %s125 = sphi 0, %s122
      %s126 = sphi 0, %s125
      %s142 = sphi 0, %s126
    $region4: #{tpu_custom_call.1} parent=1 // loop_header_branch
      %21 = sbr.rel (%p19) target = $region8
    $region5: #{tpu_custom_call.1} parent=1 // loop_body
      %s23 = ssub.s32 %s18, 1
      %s24 = ssub.s32 %s18, 2
      %s31 = sadd.s32 1, %s26
      %p32 = scmp.ge.s32.totalorder %s31, 1
      %s33 = scalar_select %p32, 0, %s31
      %s34 = sadd.s32 1, %s25
      %s35 = scalar_select %p32, %s34, %s25
      %p36 = scmp.ge.s32.totalorder %s35, 2
      %s37 = scalar_select %p36, 0, %s35
      %s38 = ssub.s32 %s25, %s37
      %s39 = ssub.s32 %s26, %s33
      %s40 = sor.u32 %s38, %s39
      %p41 = scmp.eq.s32.totalorder %s40, 0
      %s43 = sadd.s32 %s42, 1
      %s44 = scalar_select %p41, %s42, %s43
      %p47 = pneg %p41
      %p48 = scmp.eq.s32.totalorder %s18, 1
      %p49 = por %p47, %p48
      %p50 = scmp.ne.s32.totalorder %s42, %s45
      %p51 = scmp.eq.s32.totalorder %s18, 0
      %p52 = por %p50, %p51
      %p53 = scmp.ne.s32.totalorder %s42, %s45
      %p54 = scmp.eq.s32.totalorder %s23, 1
      %p55 = por %p53, %p54
      %p56 = scmp.ne.s32.totalorder %s45, %s46
      %p57 = scmp.eq.s32.totalorder %s23, 0
      %p58 = por %p56, %p57
      %p59 = scmp.ne.s32.totalorder %s45, %s46
      %p60 = scmp.eq.s32.totalorder %s24, 1
      %p61 = por %p59, %p60
      %p63 = scmp.ne.s32.totalorder %s46, %s62
      %p64 = scmp.eq.s32.totalorder %s24, 0
      %p65 = por %p63, %p64
      %s66 = ssub.s32 %s25, %s37
      %p67 = scmp.eq.s32.totalorder %s66, 0
      %s69 = sadd.s32 %s68, 1
      %s70 = scalar_select %p67, %s68, %s69
      %p73 = pneg %p67
      %p74 = scmp.eq.s32.totalorder %s18, 1
      %p75 = por %p73, %p74
      %p76 = scmp.ne.s32.totalorder %s68, %s71
      %p77 = scmp.eq.s32.totalorder %s18, 0
      %p78 = por %p76, %p77
      %p79 = scmp.ne.s32.totalorder %s68, %s71
      %p80 = scmp.eq.s32.totalorder %s23, 1
      %p81 = por %p79, %p80
      %p82 = scmp.ne.s32.totalorder %s71, %s72
      %p83 = scmp.eq.s32.totalorder %s23, 0
      %p84 = por %p82, %p83
      %p85 = scmp.ne.s32.totalorder %s71, %s72
      %p86 = scmp.eq.s32.totalorder %s24, 1
      %p87 = por %p85, %p86
      %p89 = scmp.ne.s32.totalorder %s72, %s88
      %p90 = scmp.eq.s32.totalorder %s24, 0
      %p91 = por %p89, %p90
      %s92 = ssub.s32 %s25, %s37
      %p93 = scmp.eq.s32.totalorder %s92, 0
      %s95 = sadd.s32 %s94, 1
      %s96 = scalar_select %p93, %s94, %s95
      %p99 = pneg %p93
      %p100 = scmp.eq.s32.totalorder %s18, 1
      %p101 = por %p99, %p100
      %p102 = scmp.ne.s32.totalorder %s94, %s97
      %p103 = scmp.eq.s32.totalorder %s18, 0
      %p104 = por %p102, %p103
      %p105 = scmp.ne.s32.totalorder %s94, %s97
      %p106 = scmp.eq.s32.totalorder %s23, 1
      %p107 = por %p105, %p106
      %p108 = scmp.ne.s32.totalorder %s97, %s98
      %p109 = scmp.eq.s32.totalorder %s23, 0
      %p110 = por %p108, %p109
      %p111 = scmp.ne.s32.totalorder %s97, %s98
      %p112 = scmp.eq.s32.totalorder %s24, 1
      %p113 = por %p111, %p112
      %p115 = scmp.ne.s32.totalorder %s98, %s114
      %p116 = scmp.eq.s32.totalorder %s24, 0
      %p117 = por %p115, %p116
      %s118 = ssub.s32 %s25, %s37
      %s119 = ssub.s32 %s26, %s33
      %s120 = sor.u32 %s118, %s119
      %p121 = scmp.eq.s32.totalorder %s120, 0
      %s123 = sadd.s32 %s122, 1
      %s124 = scalar_select %p121, %s122, %s123
      %p127 = pneg %p121
      %p128 = scmp.eq.s32.totalorder %s18, 1
      %p129 = por %p127, %p128
      %p130 = scmp.ne.s32.totalorder %s122, %s125
      %p131 = scmp.eq.s32.totalorder %s18, 0
      %p132 = por %p130, %p131
      %p133 = scmp.ne.s32.totalorder %s122, %s125
      %p134 = scmp.eq.s32.totalorder %s23, 1
      %p135 = por %p133, %p134
      %p136 = scmp.ne.s32.totalorder %s125, %s126
      %p137 = scmp.eq.s32.totalorder %s23, 0
      %p138 = por %p136, %p137
      %p139 = scmp.ne.s32.totalorder %s125, %s126
      %p140 = scmp.eq.s32.totalorder %s24, 1
      %p141 = por %p139, %p140
      %p143 = scmp.ne.s32.totalorder %s126, %s142
      %p144 = scmp.eq.s32.totalorder %s24, 0
      %p145 = por %p143, %p144
      %p146 = scmp.le.s32.totalorder 1, %s18
      %p147 = scmp.lt.s32.totalorder %s18, 3
      %p148 = pnand %p146, %p147
      %p149 = pneg %p148
      // Predicated region
      $region9: #{tpu_custom_call.1} parent=5 // pred_check
        _
      $region10: #{tpu_custom_call.1} parent=5 // pred_check_branch
        %151 = sbr.rel (%p148) target = $region12
      $region11: #{tpu_custom_call.1} parent=5 // pred_region
        %s152 = ssub.s32 %s18, 1
      $region12: #{tpu_custom_call.1} parent=5 // pred_fallthru
        _
      %p153 = scmp.lt.s32.totalorder %s18, 2
      // Predicated region
      $region13: #{tpu_custom_call.1} parent=5 // pred_check
        %p154 = pneg %p153
      $region14: #{tpu_custom_call.1} parent=5 // pred_check_branch
        %156 = sbr.rel (%p154) target = $region16
      $region15: #{tpu_custom_call.1} parent=5 // pred_region
        // Predicated region
        $region17: #{tpu_custom_call.1} parent=15 // pred_check
          %p157 = pneg %p52
        $region18: #{tpu_custom_call.1} parent=15 // pred_check_branch
          %159 = sbr.rel (%p157) target = $region20
        $region19: #{tpu_custom_call.1} parent=15 // pred_region
          %s160 = sand.u32 %s42, 1
          %s161 = scalar_lea.sflag [#allocation3], %s160
          %s162 = sand.u32 %s42, 1
          %s163 = smul.addr %s162, 16
          %s164 = scalar_lea.vmem [#allocation2], %s163
          %s165 = smul.u32 2, %s26
          %s167 = ssub.s32 256, 256
          %168 = vsyncadd %s161, %s167
          %s169 = smul.addr %s25, 2
          %s170 = sadd.s32 %s165, %s169
          %s171 = smul.addr %s170, 128
          %s172 = scalar_lea.hbm %s0, %s171
          %s173 = sshll.u32 %s164, 4
          %s174 = int_to_ptr.vmem [resolvable:$true] %s173
          %179 = dma.hbm_to_vmem [thread:$0]  %s172, 256, %s174, %s161, 128, 128, 8
        $region20: #{tpu_custom_call.1} parent=15 // pred_fallthru
          _
        // Predicated region
        $region21: #{tpu_custom_call.1} parent=15 // pred_check
          %p180 = pneg %p78
        $region22: #{tpu_custom_call.1} parent=15 // pred_check_branch
          %182 = sbr.rel (%p180) target = $region24
        $region23: #{tpu_custom_call.1} parent=15 // pred_region
          %s183 = sand.u32 %s68, 1
          %s184 = scalar_lea.sflag [#allocation6], %s183
          %s185 = sand.u32 %s68, 1
          %s186 = smul.addr %s185, 64
          %s187 = scalar_lea.vmem [#allocation5], %s186
          %s189 = ssub.s32 1024, 1024
          %190 = vsyncadd %s184, %s189
          %s191 = smul.addr %s25, 8
          %s192 = smul.addr %s191, 128
          %s193 = scalar_lea.hbm %s1, %s192
          %s194 = sshll.u32 %s187, 4
          %s195 = int_to_ptr.vmem [resolvable:$true] %s194
          %200 = dma.hbm_to_vmem [thread:$0]  %s193, 1024, %s195, %s184, 128, 128, 8
        $region24: #{tpu_custom_call.1} parent=15 // pred_fallthru
          _
        // Predicated region
        $region25: #{tpu_custom_call.1} parent=15 // pred_check
          %p201 = pneg %p104
        $region26: #{tpu_custom_call.1} parent=15 // pred_check_branch
          %203 = sbr.rel (%p201) target = $region28
        $region27: #{tpu_custom_call.1} parent=15 // pred_region
          %p204 = scmp.lt.s32.totalorder %s25, 1
          %s205 = scalar_select %p204, %s25, 1
          %s206 = scalar_lea.vmem %s2, %s205
        $region28: #{tpu_custom_call.1} parent=15 // pred_fallthru
          _
      $region16: #{tpu_custom_call.1} parent=5 // pred_fallthru
        _
      %p207 = scmp.le.s32.totalorder 1, %s18
      %p208 = scmp.lt.s32.totalorder %s18, 3
      %p209 = pnand %p207, %p208
      %p210 = pneg %p209
      // Predicated region
      $region29: #{tpu_custom_call.1} parent=5 // pred_check
        _
      $region30: #{tpu_custom_call.1} parent=5 // pred_check_branch
        %212 = sbr.rel (%p209) target = $region32
      $region31: #{tpu_custom_call.1} parent=5 // pred_region
        %s213 = ssub.s32 %s18, 1
        %s214 = sand.u32 %s45, 1
        %s215 = scalar_lea.sflag [#allocation3], %s214
        %s216 = sand.u32 %s45, 1
        %s217 = smul.addr %s216, 16
        %s218 = scalar_lea.vmem [#allocation2], %s217
        // Predicated region
        $region33: #{tpu_custom_call.1} parent=31 // pred_check
          %p219 = pneg %p58
        $region34: #{tpu_custom_call.1} parent=31 // pred_check_branch
          %221 = sbr.rel (%p219) target = $region36
        $region35: #{tpu_custom_call.1} parent=31 // pred_region
          %222 = dma.done %s215, 256
        $region36: #{tpu_custom_call.1} parent=31 // pred_fallthru
          _
        %s223 = sand.u32 %s71, 1
        %s224 = scalar_lea.sflag [#allocation6], %s223
        %s225 = sand.u32 %s71, 1
        %s226 = smul.addr %s225, 64
        %s227 = scalar_lea.vmem [#allocation5], %s226
        // Predicated region
        $region37: #{tpu_custom_call.1} parent=31 // pred_check
          %p228 = pneg %p84
        $region38: #{tpu_custom_call.1} parent=31 // pred_check_branch
          %230 = sbr.rel (%p228) target = $region40
        $region39: #{tpu_custom_call.1} parent=31 // pred_region
          %231 = dma.done %s224, 1024
        $region40: #{tpu_custom_call.1} parent=31 // pred_fallthru
          _
        %s232 = sand.u32 %s45, 1
        %s233 = scalar_lea.sflag [#allocation3], %s232
        %s234 = sand.u32 %s45, 1
        %s235 = smul.addr %s234, 16
        %s236 = scalar_lea.vmem [#allocation2], %s235
        %p237 = pneg %p58
        %p238 = pneg %p55
        %s239 = sand.u32 %s71, 1
        %s240 = scalar_lea.sflag [#allocation6], %s239
        %s241 = sand.u32 %s71, 1
        %s242 = smul.addr %s241, 64
        %s243 = scalar_lea.vmem [#allocation5], %s242
        %p244 = pneg %p84
        %p245 = pneg %p81
        %p246 = scmp.lt.s32.totalorder %s27, 1
        %s247 = scalar_select %p246, %s27, 1
        %s248 = scalar_lea.vmem %s2, %s247
        %p249 = pneg %p110
        %p250 = pneg %p107
        %p251 = pneg %p138
        %p252 = pneg %p135
        %s253 = sand.u32 %s125, 1
        %s254 = scalar_lea.sflag [#allocation4], %s253
        %s255 = sand.u32 %s125, 1
        %s256 = smul.addr %s255, 16
        %s257 = scalar_lea.vmem [#allocation7], %s256
        %s258 = smul.u32 2, %s28
        %p259 = scmp.lt.s32.totalorder %s27, 1
        %s260 = scalar_select %p259, %s27, 1
        %s261 = scalar_lea.vmem %s2, %s260
        %s262 = smul.u32 2, %s28
        %v263 = vld [vmem:[%s218] sm:$0xff]
        %v264 = vld [vmem:[%s218 + $0x8] sm:$0xff]
        %v265 = vld [vmem:[%s227] sm:$0xff]
        %v266 = vld [vmem:[%s227 + $0x8] sm:$0xff]
        %v267 = vld [vmem:[%s227 + $0x10] sm:$0xff]
        %v268 = vld [vmem:[%s227 + $0x18] sm:$0xff]
        %v269 = vld [vmem:[%s227 + $0x20] sm:$0xff]
        %v270 = vld [vmem:[%s227 + $0x28] sm:$0xff]
        %v271 = vld [vmem:[%s227 + $0x30] sm:$0xff]
        %v272 = vld [vmem:[%s227 + $0x38] sm:$0xff]
        %v273 = vld [vmem:[%s261] sm:$0x1]
        %v275 = vlaneseq
        %v276 = vshrl.u32 %v275, 7
        %v277 = vsub.s32 0, %v276
        %v278 = vrot.slane %v273, %v277
        %vm280 = vcmask 523264
        %v282 = vsel %vm280, %v263, 0
        %v285 = vsel %vm280, %v264, 0
        %287 = vmatprep.subr.mxu0 0.0
        %288 = vmatpush1.msra.mxu0 0.0
        %289 = vmatprep.subr.mxu0 0.0
        %290 = vmatpush1.msra.mxu0 0.0
        %291 = vmatprep.subr.mxu0 0.0
        %292 = vmatpush1.msra.mxu0 0.0
        %293 = vmatprep.subr.mxu0 0.0
        %294 = vmatpush1.msra.mxu0 0.0
        %295 = vmatprep.subr.mxu0 0.0
        %296 = vmatpush1.msra.mxu0 0.0
        %297 = vmatprep.subr.mxu0 0.0
        %298 = vmatpush1.msra.mxu0 0.0
        %299 = vmatprep.subr.mxu0 0.0
        %300 = vmatpush1.msra.mxu0 0.0
        %301 = vmatprep.subr.mxu0 0.0
        %302 = vmatpush1.msra.mxu0 0.0
        %303 = vmatprep.subr.mxu0 0.0
        %304 = vmatpush1.msra.mxu0 %v272
        %305 = vmatprep.subr.mxu0 0.0
        %306 = vmatpush1.msra.mxu0 %v271
        %307 = vmatprep.subr.mxu0 0.0
        %308 = vmatpush1.msra.mxu0 %v270
        %309 = vmatprep.subr.mxu0 0.0
        %310 = vmatpush1.msra.mxu0 %v269
        %311 = vmatprep.subr.mxu0 0.0
        %312 = vmatpush1.msra.mxu0 %v268
        %313 = vmatprep.subr.mxu0 0.0
        %314 = vmatpush1.msra.mxu0 %v267
        %315 = vmatprep.subr.mxu0 0.0
        %316 = vmatpush1.msra.mxu0 %v266
        %317 = vmatprep.subr.mxu0 0.0
        %318 = vmatpush1.msra.mxu0 %v265
        %319 = vmatprep.subr.mxu0 0.0
        %320 = vmatpush2.msra.mxu0 0.0
        %321 = vmatprep.subr.mxu0 0.0
        %322 = vmatpush2.msra.mxu0 0.0
        %323 = vmatprep.subr.mxu0 0.0
        %324 = vmatpush2.msra.mxu0 0.0
        %325 = vmatprep.subr.mxu0 0.0
        %326 = vmatpush2.msra.mxu0 0.0
        %327 = vmatprep.subr.mxu0 0.0
        %328 = vmatpush2.msra.mxu0 0.0
        %329 = vmatprep.subr.mxu0 0.0
        %330 = vmatpush2.msra.mxu0 0.0
        %331 = vmatprep.subr.mxu0 0.0
        %332 = vmatpush2.msra.mxu0 0.0
        %333 = vmatprep.subr.mxu0 0.0
        %334 = vmatpush2.msra.mxu0 0.0
        %335 = vmatprep.subr.mxu0 0.0
        %336 = vmatpush2.msra.mxu0 0.0
        %337 = vmatprep.subr.mxu0 0.0
        %338 = vmatpush2.msra.mxu0 0.0
        %339 = vmatprep.subr.mxu0 0.0
        %340 = vmatpush2.msra.mxu0 0.0
        %341 = vmatprep.subr.mxu0 0.0
        %342 = vmatpush2.msra.mxu0 0.0
        %343 = vmatprep.subr.mxu0 0.0
        %344 = vmatpush2.msra.mxu0 0.0
        %345 = vmatprep.subr.mxu0 0.0
        %346 = vmatpush2.msra.mxu0 0.0
        %347 = vmatprep.subr.mxu0 0.0
        %348 = vmatpush2.msra.mxu0 0.0
        %349 = vmatprep.subr.mxu0 0.0
        %350 = vmatpush2.msra.mxu0 0.0
        %351 = vmatprep.mubr.f32.mxu0 0.0
        %352 = vmatmul.mubr.f32.gmra.mxu0 %v282
        %v353 = vpop.f32.mrf.mxu0
        %v354 = vadd.f32 %v278, %v353
        %v355 = vpop.f32.mrf.mxu0
        %356 = vmatprep.mubr.f32.mxu0 0.0
        %357 = vmatmul.mubr.f32.gmra.mxu0 %v285
        %v358 = vpop.f32.mrf.mxu0
        %v359 = vadd.f32 %v278, %v358
        %v360 = vpop.f32.mrf.mxu0
        %361 = vdwg.mxu0
        %362 = vst [vmem:[%s257] sm:$0xff] %v354
        %363 = vst [vmem:[%s257 + $0x8] sm:$0xff] %v359
        %s364 = sand.u32 %s125, 1
        %s365 = scalar_lea.sflag [#allocation4], %s364
        %s366 = sand.u32 %s125, 1
        %s367 = smul.addr %s366, 16
        %s368 = scalar_lea.vmem [#allocation7], %s367
        // Predicated region
        $region41: #{tpu_custom_call.1} parent=31 // pred_check
          %p369 = pneg %p135
        $region42: #{tpu_custom_call.1} parent=31 // pred_check_branch
          %371 = sbr.rel (%p369) target = $region44
        $region43: #{tpu_custom_call.1} parent=31 // pred_region
          %s372 = smul.u32 2, %s28
          %s374 = ssub.s32 256, 256
          %375 = vsyncadd %s365, %s374
          %s376 = smul.addr %s27, 2
          %s377 = sadd.s32 %s372, %s376
          %s378 = smul.addr %s377, 128
          %s379 = scalar_lea.hbm %s3, %s378
          %s380 = sshll.u32 %s368, 4
          %s381 = int_to_ptr.vmem [resolvable:$true] %s380
          %386 = dma.vmem_to_hbm [thread:$0]  %s381, 256, %s379, %s365, 128, 128, 8
        $region44: #{tpu_custom_call.1} parent=31 // pred_fallthru
          _
      $region32: #{tpu_custom_call.1} parent=5 // pred_fallthru
        _
      %p387 = scmp.le.s32.totalorder 2, %s18
      // Predicated region
      $region45: #{tpu_custom_call.1} parent=5 // pred_check
        %p388 = pneg %p387
      $region46: #{tpu_custom_call.1} parent=5 // pred_check_branch
        %390 = sbr.rel (%p388) target = $region48
      $region47: #{tpu_custom_call.1} parent=5 // pred_region
        %s391 = ssub.s32 %s18, 2
        // Predicated region
        $region49: #{tpu_custom_call.1} parent=47 // pred_check
          %p392 = pneg %p141
        $region50: #{tpu_custom_call.1} parent=47 // pred_check_branch
          %394 = sbr.rel (%p392) target = $region52
        $region51: #{tpu_custom_call.1} parent=47 // pred_region
          %s395 = sand.u32 %s126, 1
          %s396 = scalar_lea.sflag [#allocation4], %s395
          %s397 = sand.u32 %s126, 1
          %s398 = smul.addr %s397, 16
          %s399 = scalar_lea.vmem [#allocation7], %s398
          %400 = dma.done %s396, 256
        $region52: #{tpu_custom_call.1} parent=47 // pred_fallthru
          _
      $region48: #{tpu_custom_call.1} parent=5 // pred_fallthru
        _
    $region6: #{tpu_custom_call.1} parent=1 // loop_footer
      %s22 = sadd.s32 1, %s18
    $region7: #{tpu_custom_call.1} parent=1 // loop_footer_branch
      %17 = sbr.rel target = $region3
    $region8: #{tpu_custom_call.1} parent=1 // loop_exit
      _
    %401 = vsyncpa [#allocation3], 1
    %s402 = scalar_lea.sflag [#allocation3], 1
    %403 = vsyncpa %s402, 1
    %404 = vsyncpa [#allocation6], 1
    %s405 = scalar_lea.sflag [#allocation6], 1
    %406 = vsyncpa %s405, 1
    %407 = vsyncpa [#allocation4], 1
    %s408 = scalar_lea.sflag [#allocation4], 1
    %409 = vsyncpa %s408, 1

</llo_original>
